<compile_context>
chip_gen: v5e
topology: v5e:2x2
jax: 0.10.0
libtpu: 0.0.40
codegen_flags: <defaults>
</compile_context>

<pallas_src>
import numpy as np

import jax
import jax.numpy as jnp
from jax.experimental import pallas as pl
from jax.experimental.pallas import tpu as pltpu


# ------------------------------ fused kernel ------------------------------- #

def _make_fused_kernel(jemb_dim, fc7_dim):
    J, F = jemb_dim, fc7_dim

    def kernel(scores_ref, pool5_ref, ann_all_ref, s0_ref, s1_ref,
               wpool_ref, wproj_ref, b_ref, comb_ref, ent_ref):
        f32 = jnp.float32

        # ---- softmax + entropy over `scores` (numerically stable) ---------
        s = scores_ref[...]                               # (S, C)
        m = jnp.max(s, axis=-1, keepdims=True)
        z = s - m
        ez = jnp.exp(z)
        denom = jnp.sum(ez, axis=-1, keepdims=True)
        logp = z - jnp.log(denom)
        p = ez / denom
        neg_plogp = -(p * logp)                           # (S, C)
        # MXU reduction -> lane-dense (1, S) entropy row (no masked column).
        ones_c = jnp.ones((1, neg_plogp.shape[-1]), f32)
        ent_ref[...] = jnp.einsum('rc,sc->rs', ones_c, neg_plogp,
                                  preferred_element_type=f32)     # (1, S)

        # ---- pair encoder -------------------------------------------------
        ann_all = ann_all_ref[...]                        # (A, F + Cp + L)
        ann_fc7 = ann_all_ref[:, :F]                      # (A, F) lane-aligned

        # single fused projection: N = 2J (fills the 256-wide MXU on v6e/v7x)
        proj = jnp.dot(ann_all, wproj_ref[...],
                       preferred_element_type=f32)        # (A, 2J)

        # merge fc7 passthrough with the projection halves, then select with
        # the static one-hot pair matrices: 2 selection passes, N = J+F = 256
        p0 = jnp.concatenate([proj[:, :J], ann_fc7], axis=1)     # (A, J+F)
        p1 = jnp.concatenate([proj[:, J:], ann_fc7], axis=1)     # (A, J+F)
        sel0 = jnp.dot(s0_ref[...], p0, preferred_element_type=f32)  # (S, J+F)
        sel1 = jnp.dot(s1_ref[...], p1, preferred_element_type=f32)  # (S, J+F)

        # sentence-side spatial mean-pool folded into the matmul via the
        # pre-expanded (1/HW-scaled) pooling weights (precomputed offline).
        pool_contrib = jnp.dot(pool5_ref[...], wpool_ref[...],
                               preferred_element_type=f32)        # (S, J)

        pair = jnp.maximum(pool_contrib + sel0[:, :J] + sel1[:, :J]
                           + b_ref[...], 0.0)                     # (S, J)

        # single lane-dense combined output: [pair | expand_1_fc7 | expand_0_fc7]
        comb_ref[...] = jnp.concatenate([pair, sel1[:, J:], sel0[:, J:]],
                                        axis=1)                   # (S, J+2F)

    return kernel


def fused_augmentation_core(scores, pool5, ann_pool5, ann_fc7, ann_fleats,
                            prepared, sent_num):
    """One pallas_call: entropy + synthetic pair encoder (pool/gather/concat
    folded into MXU matmuls).  Returns (combined (S, J+2F), entropy (S,))."""
    f32 = jnp.float32

    S = sent_num
    scores_n, C = scores.shape
    A, F = ann_fc7.shape
    n_p, Cp, H, Wd = pool5.shape
    assert n_p == S, (
        "pool5 must have sent_num rows for the pair encoder "
        f"(got {n_p}, sent_num={S})")
    assert ann_pool5.shape[1:] == (Cp, H, Wd)
    HW = H * Wd
    P = Cp * HW
    L = ann_fleats.shape[1]

    w_pool_exp = prepared["w_pool_exp"]                   # (P, J) precomputed
    w_proj = prepared["w_proj"]                           # (K_ann, 2J) precomputed
    b = prepared["b"]                                     # (1, J)
    J = w_pool_exp.shape[1]
    K_ann = F + Cp + L
    assert w_pool_exp.shape == (P, J)
    assert w_proj.shape == (K_ann, 2 * J)

    # Correctness fix: pad scores to sent_num rows (zeros -> finite entropy);
    # only the first scores_n entropy values are used downstream.
    scores_f = scores.astype(f32)
    if scores_n < S:
        scores_f = jnp.concatenate(
            [scores_f, jnp.zeros((S - scores_n, C), f32)], axis=0)

    pool5_flat = pool5.reshape(S, P).astype(f32)          # (S, Cp*HW)
    # Pre-pool ann_pool5 once (tiny) -> K_ann stays small (F+Cp+L).
    ann_pooled = ann_pool5.reshape(A, Cp, HW).mean(axis=-1).astype(f32)  # (A, Cp)
    ann_all = jnp.concatenate(
        [ann_fc7.astype(f32), ann_pooled, ann_fleats.astype(f32)], axis=1)

    # Static pair indices (k % A, (k+1) % A) baked as one-hot selection
    # matrices (compile-time constants) -> gathers become MXU matmuls.
    ids = np.arange(S)
    eye = np.eye(A, dtype=np.float32)
    s0 = jnp.asarray(eye[ids % A])                        # (S, A)
    s1 = jnp.asarray(eye[(ids + 1) % A])                  # (S, A)

    combined, ent_row = pl.pallas_call(
        _make_fused_kernel(J, F),
        grid=(1,),
        in_specs=[
            pl.BlockSpec((S, C), lambda i: (0, 0)),       # scores (padded)
            pl.BlockSpec((S, P), lambda i: (0, 0)),       # pool5_flat
            pl.BlockSpec((A, K_ann), lambda i: (0, 0)),   # ann_all
            pl.BlockSpec((S, A), lambda i: (0, 0)),       # S0
            pl.BlockSpec((S, A), lambda i: (0, 0)),       # S1
            pl.BlockSpec((P, J), lambda i: (0, 0)),       # W_pool_exp
            pl.BlockSpec((K_ann, 2 * J), lambda i: (0, 0)),  # W_proj (fused)
            pl.BlockSpec((1, J), lambda i: (0, 0)),       # bias
        ],
        out_specs=[
            pl.BlockSpec((S, J + 2 * F), lambda i: (0, 0)),  # combined
            pl.BlockSpec((1, S), lambda i: (0, 0)),          # entropy row
        ],
        out_shape=[
            jax.ShapeDtypeStruct((S, J + 2 * F), f32),
            jax.ShapeDtypeStruct((1, S), f32),
        ],
        compiler_params=pltpu.CompilerParams(
            dimension_semantics=("arbitrary",)),
    )(scores_f, pool5_flat, ann_all, s0, s1, w_pool_exp, w_proj, b)

    return combined, ent_row[0]


# ------------------------------ model pieces ------------------------------- #

def init_pair_encoder_params(key, pool_c, fc7_dim, fleat_dim, jemb_dim):
    in_dim = pool_c + 2 * fc7_dim + 2 * pool_c + fleat_dim
    (kw,) = jax.random.split(key, 1)
    w = jax.random.normal(kw, (in_dim, jemb_dim), jnp.float32) / jnp.sqrt(
        jnp.float32(in_dim))
    b = jnp.zeros((1, jemb_dim), jnp.float32)
    return {"W": w, "b": b}


def prepare_pair_encoder_params(params, pool_c, fc7_dim, fleat_dim, hw_total):
    """One-time (outside jit) weight preparation.

    Splits W along the concat layout
      [pool5_avg | fc7_0 | fc7_1 | pooled0 | pooled1 | fleat_diff]
    folds the 1/HW spatial averaging of the sentence pool5 into Kronecker-
    expanded pooling-weight rows, and fuses the two ann-side projection
    weights along the output dim into a single (K_ann, 2J) matrix.
    """
    f32 = jnp.float32
    Cp, F, L, HW = pool_c, fc7_dim, fleat_dim, hw_total
    W = params["W"].astype(f32)
    b = params["b"].astype(f32).reshape(1, -1)
    J = W.shape[1]
    assert W.shape[0] == Cp + 2 * F + 2 * Cp + L

    o = 0
    w_pool = W[o:o + Cp]; o += Cp
    w_f0 = W[o:o + F]; o += F
    w_f1 = W[o:o + F]; o += F
    w_p0 = W[o:o + Cp]; o += Cp
    w_p1 = W[o:o + Cp]; o += Cp
    w_fl = W[o:o + L]; o += L

    inv_hw = jnp.float32(1.0 / HW)
    w_pool_exp = jnp.repeat(w_pool, HW, axis=0) * inv_hw          # (Cp*HW, J)
    w_ann0 = jnp.concatenate([w_f0, w_p0, w_fl], axis=0)          # (F+Cp+L, J)
    w_ann1 = jnp.concatenate([w_f1, w_p1, -w_fl], axis=0)         # (F+Cp+L, J)
    w_proj = jnp.concatenate([w_ann0, w_ann1], axis=1)            # (K_ann, 2J)

    return {
        "w_pool_exp": jax.device_put(w_pool_exp),
        "w_proj": jax.device_put(w_proj),
        "b": jax.device_put(b),
    }


def data_augmentation_uncertainty_new(prepared, pool5, sub_wordembs,
                                      sub_classembs, obj_wordembs, rel_wordembs,
                                      ann_pool5, ann_fc7, ann_fleats, scores):
    scores_n = scores.shape[0]
    sub_n = sub_wordembs.shape[0]
    sent_num = scores_n if scores_n > sub_n else sub_n

    F = ann_fc7.shape[1]
    J = prepared["w_pool_exp"].shape[1]

    combined, entropy_full = fused_augmentation_core(
        scores, pool5, ann_pool5, ann_fc7, ann_fleats, prepared, sent_num)

    # TODO(synk): sort has no clean Pallas equivalent; argsort + the
    # data-dependent row gathers below stay in XLA (fused under one jit).
    entropy = entropy_full[:scores_n]
    indices = jnp.argsort(entropy)                        # ascending

    def rearrange(emb):
        if scores_n > sub_n:
            if scores_n > sub_n * 2:
                rep = scores_n // sub_n
                rep0 = jnp.tile(emb, (rep, 1))
                rep1 = emb[: scores_n - rep0.shape[0]]
                return jnp.concatenate([rep0, rep1], axis=0)[indices]
            else:
                # indices is a permutation of range(scores_n): exactly sub_n of
                # them are < sub_n, so the filtered size is static.
                pos = jnp.nonzero(indices < sub_n, size=sub_n)[0]
                inx1 = indices[pos]
                inx2 = inx1[: scores_n - sub_n]
                return jnp.concatenate([emb[inx1], emb[inx2]], axis=0)
        else:
            return emb[indices]

    # Single gather of the combined (S, J+2F) slab, then 3 static slices.
    combined_sorted = combined[indices]
    pair_feats = combined_sorted[:, :J]
    expand_1_fc7 = combined_sorted[:, J:J + F]
    expand_0_fc7 = combined_sorted[:, J + F:]

    return (rearrange(sub_wordembs),
            rearrange(sub_classembs),
            rearrange(obj_wordembs),
            rearrange(rel_wordembs),
            pair_feats,
            expand_1_fc7,
            expand_0_fc7)


# ------------------------------ reference ---------------------------------- #

def _reference_core(scores, pool5, ann_pool5, ann_fc7, ann_fleats, W, b,
                    sent_num):
    """Pure-JAX reference of entropy + synthetic pair encoder."""
    f32 = jnp.float32
    S = sent_num
    A = ann_fc7.shape[0]
    Cp = pool5.shape[1]
    probs = jax.nn.softmax(scores.astype(f32), axis=-1)
    entropy = -jnp.sum(probs * jnp.log(probs), axis=1)
    pool5_avg = pool5.reshape(S, Cp, -1).mean(-1)
    ann_pool5_avg = ann_pool5.reshape(A, Cp, -1).mean(-1)
    ids = np.arange(S)
    i0 = ids % A
    i1 = (ids + 1) % A
    feats = jnp.concatenate(
        [pool5_avg, ann_fc7[i0], ann_fc7[i1], ann_pool5_avg[i0],
         ann_pool5_avg[i1], ann_fleats[i0] - ann_fleats[i1]], axis=1)
    pair = jnp.maximum(feats @ W.astype(f32) + b.astype(f32), 0.0)
    return pair, ann_fc7[i1], ann_fc7[i0], entropy


# ---------------------------------- demo ----------------------------------- #

if __name__ == "__main__":
    key = jax.random.PRNGKey(0)
    ks = jax.random.split(key, 12)

    sent_num = 8      # scores.size(0) == sub_wordembs.size(0) -> "else" branch
    n_ann = 6
    emb_dim = 64
    pool_c, hw = 4, 8          # pool5 spatial = 8x8 -> HW = 64, Cp*HW = 256
    fc7_dim = 128              # lane-dense expand_{0,1}_fc7 outputs
    fleat_dim = 5
    n_classes = 16
    jemb_dim = 128             # lane-dense pair_feats output

    pool5 = jax.random.normal(ks[0], (sent_num, pool_c, hw, hw), jnp.float32)
    sub_wordembs = jax.random.normal(ks[1], (sent_num, emb_dim), jnp.float32)
    sub_classembs = jax.random.normal(ks[2], (sent_num, emb_dim), jnp.float32)
    obj_wordembs = jax.random.normal(ks[3], (sent_num, emb_dim), jnp.float32)
    rel_wordembs = jax.random.normal(ks[4], (sent_num, emb_dim), jnp.float32)
    ann_pool5 = jax.random.normal(ks[5], (n_ann, pool_c, hw, hw), jnp.float32)
    ann_fc7 = jax.random.normal(ks[6], (n_ann, fc7_dim), jnp.float32)
    ann_fleats = jax.random.normal(ks[7], (n_ann, fleat_dim), jnp.float32)
    scores = jax.random.normal(ks[8], (sent_num, n_classes), jnp.float32)

    raw_params = init_pair_encoder_params(ks[9], pool_c, fc7_dim, fleat_dim,
                                          jemb_dim)
    # One-time weight preparation (outside the jit'd forward path).
    prepared = prepare_pair_encoder_params(raw_params, pool_c, fc7_dim,
                                           fleat_dim, hw * hw)

    # ---- numeric check of the fused kernel against a pure-JAX reference ----
    combined, entropy_k = fused_augmentation_core(
        scores, pool5, ann_pool5, ann_fc7, ann_fleats, prepared, sent_num)
    pair_r, e1_r, e0_r, ent_r = _reference_core(
        scores, pool5, ann_pool5, ann_fc7, ann_fleats,
        raw_params["W"], raw_params["b"], sent_num)
    assert jnp.allclose(combined[:, :jemb_dim], pair_r, atol=1e-4, rtol=1e-4)
    assert jnp.allclose(combined[:, jemb_dim:jemb_dim + fc7_dim], e1_r,
                        atol=1e-4, rtol=1e-4)
    assert jnp.allclose(combined[:, jemb_dim + fc7_dim:], e0_r,
                        atol=1e-4, rtol=1e-4)
    assert jnp.allclose(entropy_k, ent_r, atol=1e-4, rtol=1e-4)

    # ---- full forward ------------------------------------------------------
    fwd = jax.jit(data_augmentation_uncertainty_new)
    outs = fwd(prepared, pool5, sub_wordembs, sub_classembs, obj_wordembs,
               rel_wordembs, ann_pool5, ann_fc7, ann_fleats, scores)
    outs = jax.block_until_ready(outs)

    expected_shapes = [
        (sent_num, emb_dim), (sent_num, emb_dim), (sent_num, emb_dim),
        (sent_num, emb_dim), (sent_num, jemb_dim), (sent_num, fc7_dim),
        (sent_num, fc7_dim),
    ]
    assert all(o.shape == s for o, s in zip(outs, expected_shapes)), \
        [o.shape for o in outs]
    assert all(bool(jnp.all(jnp.isfinite(o))) for o in outs)
    print("KERNEL_OK")
</pallas_src>

<mosaic_0001>
module attributes {stable_mosaic.version = 11 : i64} {
  func.func @kernel(%arg0: i32, %arg1: memref<8x16xf32, #tpu.memory_space<vmem>>, %arg2: memref<8x256xf32, #tpu.memory_space<vmem>>, %arg3: memref<6x137xf32, #tpu.memory_space<vmem>>, %arg4: memref<8x6xf32, #tpu.memory_space<vmem>>, %arg5: memref<8x6xf32, #tpu.memory_space<vmem>>, %arg6: memref<256x128xf32, #tpu.memory_space<vmem>>, %arg7: memref<137x256xf32, #tpu.memory_space<vmem>>, %arg8: memref<1x128xf32, #tpu.memory_space<vmem>>, %arg9: memref<8x384xf32, #tpu.memory_space<vmem>>, %arg10: memref<1x8xf32, #tpu.memory_space<vmem>>) attributes {dimension_semantics = [#tpu.dimension_semantics<arbitrary>], iteration_bounds = array<i64: 1>, scalar_prefetch = 0 : i64, scratch_operands = 0 : i64, tpu.core_type = #tpu.core_type<tc>, window_params = [{pipeline_mode = #tpu.pipeline_mode<synchronous>, transform_indices = @transform_0, window_bounds = array<i64: 8, 16>}, {pipeline_mode = #tpu.pipeline_mode<synchronous>, transform_indices = @transform_1, window_bounds = array<i64: 8, 256>}, {pipeline_mode = #tpu.pipeline_mode<synchronous>, transform_indices = @transform_2, window_bounds = array<i64: 6, 137>}, {pipeline_mode = #tpu.pipeline_mode<synchronous>, transform_indices = @transform_3, window_bounds = array<i64: 8, 6>}, {pipeline_mode = #tpu.pipeline_mode<synchronous>, transform_indices = @transform_4, window_bounds = array<i64: 8, 6>}, {pipeline_mode = #tpu.pipeline_mode<synchronous>, transform_indices = @transform_5, window_bounds = array<i64: 256, 128>}, {pipeline_mode = #tpu.pipeline_mode<synchronous>, transform_indices = @transform_6, window_bounds = array<i64: 137, 256>}, {pipeline_mode = #tpu.pipeline_mode<synchronous>, transform_indices = @transform_7, window_bounds = array<i64: 1, 128>}, {pipeline_mode = #tpu.pipeline_mode<synchronous>, transform_indices = @transform_8, window_bounds = array<i64: 8, 384>}, {pipeline_mode = #tpu.pipeline_mode<synchronous>, transform_indices = @transform_9, window_bounds = array<i64: 1, 8>}]} {
    %c0 = arith.constant 0 : index
    %c0_0 = arith.constant 0 : index
    %0 = vector.load %arg1[%c0, %c0_0] : memref<8x16xf32, #tpu.memory_space<vmem>>, vector<8x16xf32>
    %cst = arith.constant dense<0xFF800000> : vector<8xf32>
    %1 = vector.multi_reduction <maximumf>, %0, %cst [1] : vector<8x16xf32> to vector<8xf32>
    %2 = vector.shape_cast %1 : vector<8xf32> to vector<8x1xf32>
    %3 = vector.broadcast %2 : vector<8x1xf32> to vector<8x16xf32>
    %4 = arith.subf %0, %3 : vector<8x16xf32>
    %5 = math.exp %4 : vector<8x16xf32>
    %cst_1 = arith.constant dense<0.000000e+00> : vector<8xf32>
    %6 = vector.multi_reduction <add>, %5, %cst_1 [1] : vector<8x16xf32> to vector<8xf32>
    %7 = vector.shape_cast %6 : vector<8xf32> to vector<8x1xf32>
    %8 = math.log %7 : vector<8x1xf32>
    %9 = vector.broadcast %8 : vector<8x1xf32> to vector<8x16xf32>
    %10 = arith.subf %4, %9 : vector<8x16xf32>
    %11 = vector.broadcast %7 : vector<8x1xf32> to vector<8x16xf32>
    %12 = arith.divf %5, %11 : vector<8x16xf32>
    %13 = arith.mulf %12, %10 : vector<8x16xf32>
    %cst_2 = arith.constant 0.000000e+00 : f32
    %14 = vector.broadcast %cst_2 : f32 to vector<8x16xf32>
    %15 = arith.subf %14, %13 : vector<8x16xf32>
    %cst_3 = arith.constant 1.000000e+00 : f32
    %16 = vector.broadcast %cst_3 : f32 to vector<1x16xf32>
    "tpu.trace_start"() <{level = 10 : i32, message = "rc,sc->rs"}> : () -> ()
    %cst_4 = arith.constant dense<0.000000e+00> : vector<1x8xf32>
    %17 = tpu.matmul %16, %15, %cst_4 {dimension_numbers = #tpu.dot_dimension_numbers<[1], [1], [0], [0], [0, 0, 1, 0], [], []>} : vector<1x16xf32>, vector<8x16xf32>, vector<1x8xf32> -> vector<1x8xf32>
    "tpu.trace_stop"() : () -> ()
    %c0_5 = arith.constant 0 : index
    %c0_6 = arith.constant 0 : index
    %18 = vector.load %arg10[%c0_5, %c0_6] : memref<1x8xf32, #tpu.memory_space<vmem>>, vector<1x8xf32>
    tpu.vector_store %arg10[%c0_5, %c0_6], %17 {strides = array<i32>} : memref<1x8xf32, #tpu.memory_space<vmem>>, vector<1x8xf32>,
    %c0_7 = arith.constant 0 : index
    %c0_8 = arith.constant 0 : index
    %19 = vector.load %arg3[%c0_7, %c0_8] : memref<6x137xf32, #tpu.memory_space<vmem>>, vector<6x137xf32>
    %c0_9 = arith.constant 0 : index
    %c0_10 = arith.constant 0 : index
    %20 = vector.load %arg3[%c0_9, %c0_10] : memref<6x137xf32, #tpu.memory_space<vmem>>, vector<6x128xf32>
    %c0_11 = arith.constant 0 : index
    %c0_12 = arith.constant 0 : index
    %21 = vector.load %arg7[%c0_11, %c0_12] : memref<137x256xf32, #tpu.memory_space<vmem>>, vector<137x256xf32>
    %cst_13 = arith.constant dense<0.000000e+00> : vector<6x256xf32>
    %22 = tpu.matmul %19, %21, %cst_13 {dimension_numbers = #tpu.dot_dimension_numbers<[1], [0], [0], [1], [0, 0, 1, 1], [], []>} : vector<6x137xf32>, vector<137x256xf32>, vector<6x256xf32> -> vector<6x256xf32>
    %23 = vector.extract_strided_slice %22 {offsets = [0, 0], sizes = [6, 128], strides = [1, 1]} : vector<6x256xf32> to vector<6x128xf32>
    %24 = tpu.concatenate %23, %20 in 1 : vector<6x128xf32>, vector<6x128xf32> -> vector<6x256xf32>
    %25 = vector.extract_strided_slice %22 {offsets = [0, 128], sizes = [6, 128], strides = [1, 1]} : vector<6x256xf32> to vector<6x128xf32>
    %26 = tpu.concatenate %25, %20 in 1 : vector<6x128xf32>, vector<6x128xf32> -> vector<6x256xf32>
    %c0_14 = arith.constant 0 : index
    %c0_15 = arith.constant 0 : index
    %27 = vector.load %arg4[%c0_14, %c0_15] : memref<8x6xf32, #tpu.memory_space<vmem>>, vector<8x6xf32>
    %cst_16 = arith.constant dense<0.000000e+00> : vector<8x256xf32>
    %28 = tpu.matmul %27, %24, %cst_16 {dimension_numbers = #tpu.dot_dimension_numbers<[1], [0], [0], [1], [0, 0, 1, 1], [], []>} : vector<8x6xf32>, vector<6x256xf32>, vector<8x256xf32> -> vector<8x256xf32>
    %c0_17 = arith.constant 0 : index
    %c0_18 = arith.constant 0 : index
    %29 = vector.load %arg5[%c0_17, %c0_18] : memref<8x6xf32, #tpu.memory_space<vmem>>, vector<8x6xf32>
    %cst_19 = arith.constant dense<0.000000e+00> : vector<8x256xf32>
    %30 = tpu.matmul %29, %26, %cst_19 {dimension_numbers = #tpu.dot_dimension_numbers<[1], [0], [0], [1], [0, 0, 1, 1], [], []>} : vector<8x6xf32>, vector<6x256xf32>, vector<8x256xf32> -> vector<8x256xf32>
    %c0_20 = arith.constant 0 : index
    %c0_21 = arith.constant 0 : index
    %31 = vector.load %arg2[%c0_20, %c0_21] : memref<8x256xf32, #tpu.memory_space<vmem>>, vector<8x256xf32>
    %c0_22 = arith.constant 0 : index
    %c0_23 = arith.constant 0 : index
    %32 = vector.load %arg6[%c0_22, %c0_23] : memref<256x128xf32, #tpu.memory_space<vmem>>, vector<256x128xf32>
    %cst_24 = arith.constant dense<0.000000e+00> : vector<8x128xf32>
    %33 = tpu.matmul %31, %32, %cst_24 {dimension_numbers = #tpu.dot_dimension_numbers<[1], [0], [0], [1], [0, 0, 1, 1], [], []>} : vector<8x256xf32>, vector<256x128xf32>, vector<8x128xf32> -> vector<8x128xf32>
    %34 = vector.extract_strided_slice %28 {offsets = [0, 0], sizes = [8, 128], strides = [1, 1]} : vector<8x256xf32> to vector<8x128xf32>
    %35 = arith.addf %33, %34 : vector<8x128xf32>
    %36 = vector.extract_strided_slice %30 {offsets = [0, 0], sizes = [8, 128], strides = [1, 1]} : vector<8x256xf32> to vector<8x128xf32>
    %37 = arith.addf %35, %36 : vector<8x128xf32>
    %c0_25 = arith.constant 0 : index
    %c0_26 = arith.constant 0 : index
    %38 = vector.load %arg8[%c0_25, %c0_26] : memref<1x128xf32, #tpu.memory_space<vmem>>, vector<1x128xf32>
    %39 = vector.broadcast %38 : vector<1x128xf32> to vector<8x128xf32>
    %40 = arith.addf %37, %39 : vector<8x128xf32>
    %cst_27 = arith.constant 0.000000e+00 : f32
    %41 = vector.broadcast %cst_27 : f32 to vector<8x128xf32>
    %42 = arith.maximumf %40, %41 : vector<8x128xf32>
    %43 = vector.extract_strided_slice %30 {offsets = [0, 128], sizes = [8, 128], strides = [1, 1]} : vector<8x256xf32> to vector<8x128xf32>
    %44 = vector.extract_strided_slice %28 {offsets = [0, 128], sizes = [8, 128], strides = [1, 1]} : vector<8x256xf32> to vector<8x128xf32>
    %45 = tpu.concatenate %42, %43, %44 in 1 : vector<8x128xf32>, vector<8x128xf32>, vector<8x128xf32> -> vector<8x384xf32>
    %c0_28 = arith.constant 0 : index
    %c0_29 = arith.constant 0 : index
    %46 = vector.load %arg9[%c0_28, %c0_29] : memref<8x384xf32, #tpu.memory_space<vmem>>, vector<8x384xf32>
    tpu.vector_store %arg9[%c0_28, %c0_29], %45 {strides = array<i32>} : memref<8x384xf32, #tpu.memory_space<vmem>>, vector<8x384xf32>,
    return
  }
  func.func @transform_0(%arg0: i32) -> (i32, i32) {
    %c0_i32 = arith.constant 0 : i32
    %c0_i32_0 = arith.constant 0 : i32
    %c0_i32_1 = arith.constant 0 : i32
    return %c0_i32, %c0_i32_0 : i32, i32
  }
  func.func @transform_1(%arg0: i32) -> (i32, i32) {
    %c0_i32 = arith.constant 0 : i32
    %c0_i32_0 = arith.constant 0 : i32
    %c0_i32_1 = arith.constant 0 : i32
    return %c0_i32, %c0_i32_0 : i32, i32
  }
  func.func @transform_2(%arg0: i32) -> (i32, i32) {
    %c0_i32 = arith.constant 0 : i32
    %c0_i32_0 = arith.constant 0 : i32
    %c0_i32_1 = arith.constant 0 : i32
    return %c0_i32, %c0_i32_0 : i32, i32
  }
  func.func @transform_3(%arg0: i32) -> (i32, i32) {
    %c0_i32 = arith.constant 0 : i32
    %c0_i32_0 = arith.constant 0 : i32
    %c0_i32_1 = arith.constant 0 : i32
    return %c0_i32, %c0_i32_0 : i32, i32
  }
  func.func @transform_4(%arg0: i32) -> (i32, i32) {
    %c0_i32 = arith.constant 0 : i32
    %c0_i32_0 = arith.constant 0 : i32
    %c0_i32_1 = arith.constant 0 : i32
    return %c0_i32, %c0_i32_0 : i32, i32
  }
  func.func @transform_5(%arg0: i32) -> (i32, i32) {
    %c0_i32 = arith.constant 0 : i32
    %c0_i32_0 = arith.constant 0 : i32
    %c0_i32_1 = arith.constant 0 : i32
    return %c0_i32, %c0_i32_0 : i32, i32
  }
  func.func @transform_6(%arg0: i32) -> (i32, i32) {
    %c0_i32 = arith.constant 0 : i32
    %c0_i32_0 = arith.constant 0 : i32
    %c0_i32_1 = arith.constant 0 : i32
    return %c0_i32, %c0_i32_0 : i32, i32
  }
  func.func @transform_7(%arg0: i32) -> (i32, i32) {
    %c0_i32 = arith.constant 0 : i32
    %c0_i32_0 = arith.constant 0 : i32
    %c0_i32_1 = arith.constant 0 : i32
    return %c0_i32, %c0_i32_0 : i32, i32
  }
  func.func @transform_8(%arg0: i32) -> (i32, i32) {
    %c0_i32 = arith.constant 0 : i32
    %c0_i32_0 = arith.constant 0 : i32
    %c0_i32_1 = arith.constant 0 : i32
    return %c0_i32, %c0_i32_0 : i32, i32
  }
  func.func @transform_9(%arg0: i32) -> (i32, i32) {
    %c0_i32 = arith.constant 0 : i32
    %c0_i32_0 = arith.constant 0 : i32
    %c0_i32_1 = arith.constant 0 : i32
    return %c0_i32, %c0_i32_0 : i32, i32
  }
}

</mosaic_0001>

<llo_original>
// kernel: tpu_custom_call.1
$region0: #{tpu_custom_call.1}
  #allocation0 [shape = 'u32[]', space=smem, size = 0x4, offset = 0x4, fixed_abs, tag = 'smem constant byte address 0x4 - core index']
  #allocation1 [shape = 'u32[72,128]{1,0:T(1,128)}', space=vmem, size = 0x9000, scoped, tag = 'internal scratch']
  %s0 = inlined_call_operand.hbm [shape: f32[8,16], index: 0, kind: input, shape index: {}]
  %s1 = inlined_call_operand.hbm [shape: f32[8,256], index: 1, kind: input, shape index: {}]
  %s2 = inlined_call_operand.hbm [shape: f32[6,137], index: 2, kind: input, shape index: {}]
  %s3 = inlined_call_operand.hbm [shape: f32[8,6], index: 3, kind: input, shape index: {}]
  %s4 = inlined_call_operand.hbm [shape: f32[8,6], index: 4, kind: input, shape index: {}]
  %s5 = inlined_call_operand.hbm [shape: f32[256,128], index: 5, kind: input, shape index: {}]
  %s6 = inlined_call_operand.hbm [shape: f32[137,256], index: 6, kind: input, shape index: {}]
  %s7 = inlined_call_operand.vmem [shape: f32[1,128], index: 7, kind: input, shape index: {}]
  %s8 = inlined_call_operand.hbm [shape: f32[8,384], index: 8, kind: output, shape index: {0}]
  %s9 = inlined_call_operand.hbm [shape: f32[1,8], index: 9, kind: output, shape index: {1}]
  %10 = xla_tuple %s8, %s9
  %s11 = sld [smem:[#allocation0]]
  $region78: #{tpu_custom_call.1} parent=0
    _
  %s13 = ssub.s32 1, %s11
  %s14 = scalar_select 0, %s13, %s11
  $region1: #{tpu_custom_call.1} parent=0
    #allocation2 [shape = 'u8[4096]{0}', space=vmem, size = 0x1000, scoped, tag = 'input window, operand 0, single buffered']
    #allocation3 [shape = 's32[1]{0}', space=sflag, size = 0x4, scoped, tag = 'scoped memory for tpu_custom_call.1']
    #allocation4 [shape = 's32[1]{0}', space=sflag, size = 0x4, scoped, tag = 'scoped memory for tpu_custom_call.1']
    #allocation5 [shape = 'u8[8192]{0}', space=vmem, size = 0x2000, scoped, tag = 'input window, operand 1, single buffered']
    #allocation6 [shape = 's32[1]{0}', space=sflag, size = 0x4, scoped, tag = 'scoped memory for tpu_custom_call.1']
    #allocation7 [shape = 'u8[8192]{0}', space=vmem, size = 0x2000, scoped, tag = 'input window, operand 2, single buffered']
    #allocation8 [shape = 'u8[4096]{0}', space=vmem, size = 0x1000, scoped, tag = 'input window, operand 3, single buffered']
    #allocation9 [shape = 's32[1]{0}', space=sflag, size = 0x4, scoped, tag = 'scoped memory for tpu_custom_call.1']
    #allocation10 [shape = 'u8[4096]{0}', space=vmem, size = 0x1000, scoped, tag = 'input window, operand 4, single buffered']
    #allocation11 [shape = 'u8[131072]{0}', space=vmem, size = 0x20000, scoped, tag = 'input window, operand 5, single buffered']
    #allocation12 [shape = 's32[1]{0}', space=sflag, size = 0x4, scoped, tag = 'scoped memory for tpu_custom_call.1']
    #allocation13 [shape = 'u8[147456]{0}', space=vmem, size = 0x24000, scoped, tag = 'input window, operand 6, single buffered']
    #allocation14 [shape = 'u8[12288]{0}', space=vmem, size = 0x3000, scoped, tag = 'output window, operand 0, single buffered']
    #allocation15 [shape = 'u8[512]{0}', space=vmem, size = 0x400, scoped, tag = 'output window, operand 1, single buffered']
    #allocation16 [shape = 's32[1]{0}', space=sflag, size = 0x4, scoped, tag = 'scoped memory for tpu_custom_call.1']
    %15 = vsyncpa [#allocation3], 0
    %16 = vsyncpa [#allocation6], 0
    %17 = vsyncpa [#allocation9], 0
    %18 = vsyncpa [#allocation12], 0
    %19 = vsyncpa [#allocation4], 0
    %20 = vsyncpa [#allocation16], 0
    // Predicated region
    $region2: #{tpu_custom_call.1} parent=1 // pred_check
      _
    $region3: #{tpu_custom_call.1} parent=1 // pred_check_branch
      %22 = sbr.rel (0) target = $region5
    $region4: #{tpu_custom_call.1} parent=1 // pred_region
      %24 = vsyncadd [#allocation3], 0
      %s26 = sshll.u32 %s0, 4
      %s27 = int_to_ptr.hbm [resolvable:$true] %s26
      %s28 = sshll.u32 [#allocation2], 4
      %s29 = int_to_ptr.vmem [resolvable:$true] %s28
      %31 = dma.hbm_to_vmem [thread:$0]  %s27, 128, %s29, [#allocation3]
    $region5: #{tpu_custom_call.1} parent=1 // pred_fallthru
      _
    // Predicated region
    $region6: #{tpu_custom_call.1} parent=1 // pred_check
      _
    $region7: #{tpu_custom_call.1} parent=1 // pred_check_branch
      %33 = sbr.rel (0) target = $region9
    $region8: #{tpu_custom_call.1} parent=1 // pred_region
      %35 = vsyncadd [#allocation6], 0
      %s37 = sshll.u32 %s1, 4
      %s38 = int_to_ptr.hbm [resolvable:$true] %s37
      %s39 = sshll.u32 [#allocation5], 4
      %s40 = int_to_ptr.vmem [resolvable:$true] %s39
      %42 = dma.hbm_to_vmem [thread:$0]  %s38, 256, %s40, [#allocation6]
    $region9: #{tpu_custom_call.1} parent=1 // pred_fallthru
      _
    // Predicated region
    $region10: #{tpu_custom_call.1} parent=1 // pred_check
      _
    $region11: #{tpu_custom_call.1} parent=1 // pred_check_branch
      %44 = sbr.rel (0) target = $region13
    $region12: #{tpu_custom_call.1} parent=1 // pred_region
      %46 = vsyncadd [#allocation6], 0
      %s48 = sshll.u32 %s2, 4
      %s49 = int_to_ptr.hbm [resolvable:$true] %s48
      %s50 = sshll.u32 [#allocation7], 4
      %s51 = int_to_ptr.vmem [resolvable:$true] %s50
      %53 = dma.hbm_to_vmem [thread:$0]  %s49, 256, %s51, [#allocation6]
    $region13: #{tpu_custom_call.1} parent=1 // pred_fallthru
      _
    // Predicated region
    $region14: #{tpu_custom_call.1} parent=1 // pred_check
      _
    $region15: #{tpu_custom_call.1} parent=1 // pred_check_branch
      %55 = sbr.rel (0) target = $region17
    $region16: #{tpu_custom_call.1} parent=1 // pred_region
      %57 = vsyncadd [#allocation9], 0
      %s59 = sshll.u32 %s3, 4
      %s60 = int_to_ptr.hbm [resolvable:$true] %s59
      %s61 = sshll.u32 [#allocation8], 4
      %s62 = int_to_ptr.vmem [resolvable:$true] %s61
      %64 = dma.hbm_to_vmem [thread:$0]  %s60, 128, %s62, [#allocation9]
    $region17: #{tpu_custom_call.1} parent=1 // pred_fallthru
      _
    // Predicated region
    $region18: #{tpu_custom_call.1} parent=1 // pred_check
      _
    $region19: #{tpu_custom_call.1} parent=1 // pred_check_branch
      %66 = sbr.rel (0) target = $region21
    $region20: #{tpu_custom_call.1} parent=1 // pred_region
      %68 = vsyncadd [#allocation9], 0
      %s70 = sshll.u32 %s4, 4
      %s71 = int_to_ptr.hbm [resolvable:$true] %s70
      %s72 = sshll.u32 [#allocation10], 4
      %s73 = int_to_ptr.vmem [resolvable:$true] %s72
      %75 = dma.hbm_to_vmem [thread:$0]  %s71, 128, %s73, [#allocation9]
    $region21: #{tpu_custom_call.1} parent=1 // pred_fallthru
      _
    // Predicated region
    $region22: #{tpu_custom_call.1} parent=1 // pred_check
      _
    $region23: #{tpu_custom_call.1} parent=1 // pred_check_branch
      %77 = sbr.rel (0) target = $region25
    $region24: #{tpu_custom_call.1} parent=1 // pred_region
      %79 = vsyncadd [#allocation12], 0
      %s80 = sshll.u32 %s5, 4
      %s81 = int_to_ptr.hbm [resolvable:$true] %s80
      %s82 = sshll.u32 [#allocation11], 4
      %s83 = int_to_ptr.vmem [resolvable:$true] %s82
      %88 = dma.hbm_to_vmem [thread:$0]  %s81, 4096, %s83, [#allocation12], 128, 128, 8
    $region25: #{tpu_custom_call.1} parent=1 // pred_fallthru
      _
    // Predicated region
    $region26: #{tpu_custom_call.1} parent=1 // pred_check
      _
    $region27: #{tpu_custom_call.1} parent=1 // pred_check_branch
      %90 = sbr.rel (0) target = $region29
    $region28: #{tpu_custom_call.1} parent=1 // pred_region
      %92 = vsyncadd [#allocation12], 0
      %s93 = sshll.u32 %s6, 4
      %s94 = int_to_ptr.hbm [resolvable:$true] %s93
      %s95 = sshll.u32 [#allocation13], 4
      %s96 = int_to_ptr.vmem [resolvable:$true] %s95
      %101 = dma.hbm_to_vmem [thread:$0]  %s94, 4608, %s96, [#allocation12], 256, 256, 16
    $region29: #{tpu_custom_call.1} parent=1 // pred_fallthru
      _
    // Predicated region
    $region30: #{tpu_custom_call.1} parent=1 // pred_check
      _
    $region31: #{tpu_custom_call.1} parent=1 // pred_check_branch
      %103 = sbr.rel (0) target = $region33
    $region32: #{tpu_custom_call.1} parent=1 // pred_region
      _
    $region33: #{tpu_custom_call.1} parent=1 // pred_fallthru
      _
    // Predicated region
    $region34: #{tpu_custom_call.1} parent=1 // pred_check
      _
    $region35: #{tpu_custom_call.1} parent=1 // pred_check_branch
      %105 = sbr.rel (0) target = $region37
    $region36: #{tpu_custom_call.1} parent=1 // pred_region
      %107 = dma.done [#allocation3], 128
    $region37: #{tpu_custom_call.1} parent=1 // pred_fallthru
      _
    // Predicated region
    $region38: #{tpu_custom_call.1} parent=1 // pred_check
      _
    $region39: #{tpu_custom_call.1} parent=1 // pred_check_branch
      %109 = sbr.rel (0) target = $region41
    $region40: #{tpu_custom_call.1} parent=1 // pred_region
      %111 = dma.done [#allocation6], 256
    $region41: #{tpu_custom_call.1} parent=1 // pred_fallthru
      _
    // Predicated region
    $region42: #{tpu_custom_call.1} parent=1 // pred_check
      _
    $region43: #{tpu_custom_call.1} parent=1 // pred_check_branch
      %113 = sbr.rel (0) target = $region45
    $region44: #{tpu_custom_call.1} parent=1 // pred_region
      %115 = dma.done [#allocation6], 256
    $region45: #{tpu_custom_call.1} parent=1 // pred_fallthru
      _
    // Predicated region
    $region46: #{tpu_custom_call.1} parent=1 // pred_check
      _
    $region47: #{tpu_custom_call.1} parent=1 // pred_check_branch
      %117 = sbr.rel (0) target = $region49
    $region48: #{tpu_custom_call.1} parent=1 // pred_region
      %119 = dma.done [#allocation9], 128
    $region49: #{tpu_custom_call.1} parent=1 // pred_fallthru
      _
    // Predicated region
    $region50: #{tpu_custom_call.1} parent=1 // pred_check
      _
    $region51: #{tpu_custom_call.1} parent=1 // pred_check_branch
      %121 = sbr.rel (0) target = $region53
    $region52: #{tpu_custom_call.1} parent=1 // pred_region
      %123 = dma.done [#allocation9], 128
    $region53: #{tpu_custom_call.1} parent=1 // pred_fallthru
      _
    // Predicated region
    $region54: #{tpu_custom_call.1} parent=1 // pred_check
      _
    $region55: #{tpu_custom_call.1} parent=1 // pred_check_branch
      %125 = sbr.rel (0) target = $region57
    $region56: #{tpu_custom_call.1} parent=1 // pred_region
      %127 = dma.done [#allocation12], 4096
    $region57: #{tpu_custom_call.1} parent=1 // pred_fallthru
      _
    // Predicated region
    $region58: #{tpu_custom_call.1} parent=1 // pred_check
      _
    $region59: #{tpu_custom_call.1} parent=1 // pred_check_branch
      %129 = sbr.rel (0) target = $region61
    $region60: #{tpu_custom_call.1} parent=1 // pred_region
      %131 = dma.done [#allocation12], 4608
    $region61: #{tpu_custom_call.1} parent=1 // pred_fallthru
      _
    %v132 = vld [vmem:[#allocation2] sm:$0xff]
    %vm133 = vcmask 130048
    %v134 = vsel %vm133, %v132, -inf
    %135 = vmax.xlane.f32.xlu0 %v134
    %v136 = vpop.xlane.xlu0 %135
    %v137 = vsub.f32 %v132, %v136
    %v138 = vmul.f32 %v137, 1.442695
    %v139 = vpow.pop %v138
    %v140 = vsel %vm133, %v139, 0.0
    %141 = vadd.xlane.f32.xlu0 %v140
    %v142 = vpop.xlane.xlu0 %141
    %v143 = vlog2.pop %v142
    %v144 = vmul.f32 %v143, 0.6931472
    %v145 = vsub.f32 %v137, %v144
    %v146 = vrcp.pop %v142
    %v147 = vmul.f32 %v142, %v146
    %v148 = vsub.f32 1.0, %v147
    %v149 = vmul.f32 %v146, %v148
    %v150 = vadd.f32 %v146, %v149
    %vm151 = vweird.f32 %v142
    %vm152 = vweird.f32 %v146
    %vm153 = vmor %vm151, %vm152
    %v154 = vsel %vm153, %v146, %v150
    %v155 = vand.u32 2147483647, %v142
    %vm156 = vcmp.eq.f32.partialorder %v155, 8.507059e+37
    %v157 = vand.u32 %v142, 2147483648
    %v158 = vor.u32 1.1754944e-38, %v157
    %v159 = vsel %vm156, %v158, %v154
    %v160 = vmul.f32 %v139, %v159
    %v161 = vmul.f32 %v160, %v145
    %v162 = vsub.f32 0.0, %v161
    %v164 = vsel %vm133, 1.0, 0
    %v167 = vsel %vm133, %v162, 0
    %169 = vmatpush.xpose.msra.mxu0 0.0
    %170 = vmatpush.xpose.msra.mxu0 0.0
    %171 = vmatpush.xpose.msra.mxu0 0.0
    %172 = vmatpush.xpose.msra.mxu0 0.0
    %173 = vmatpush.xpose.msra.mxu0 0.0
    %174 = vmatpush.xpose.msra.mxu0 0.0
    %175 = vmatpush.xpose.msra.mxu0 0.0
    %176 = vmatpush.xpose.msra.mxu0 0.0
    %177 = vmatpush.xpose.msra.mxu0 0.0
    %178 = vmatpush.xpose.msra.mxu0 0.0
    %179 = vmatpush.xpose.msra.mxu0 0.0
    %180 = vmatpush.xpose.msra.mxu0 0.0
    %181 = vmatpush.xpose.msra.mxu0 0.0
    %182 = vmatpush.xpose.msra.mxu0 0.0
    %183 = vmatpush.xpose.msra.mxu0 0.0
    %184 = vmatpush.xpose.msra.mxu0 %v167
    %185 = vmatmul.f32.gmra.mxu0 %v164
    %v186 = vpop.f32.mrf.mxu0
    %v187 = vadd.f32 0.0, %v186
    %188 = vdwg.mxu0
    %vm189 = vcmask 57344
    %190 = vst.msk [vmem:[#allocation15] sm:$0x1] %vm189, %v187
    %v191 = vld [vmem:[#allocation7] sm:$0x3f]
    %v192 = vld [vmem:[#allocation7 + $0x8] sm:$0x3f]
    %v193 = vld [vmem:[#allocation13] sm:$0xff]
    %v194 = vld [vmem:[#allocation13 + $0x8] sm:$0xff]
    %v195 = vld [vmem:[#allocation13 + $0x10] sm:$0xff]
    %v196 = vld [vmem:[#allocation13 + $0x18] sm:$0xff]
    %v197 = vld [vmem:[#allocation13 + $0x20] sm:$0xff]
    %v198 = vld [vmem:[#allocation13 + $0x28] sm:$0xff]
    %v199 = vld [vmem:[#allocation13 + $0x30] sm:$0xff]
    %v200 = vld [vmem:[#allocation13 + $0x38] sm:$0xff]
    %v201 = vld [vmem:[#allocation13 + $0x40] sm:$0xff]
    %v202 = vld [vmem:[#allocation13 + $0x48] sm:$0xff]
    %v203 = vld [vmem:[#allocation13 + $0x50] sm:$0xff]
    %v204 = vld [vmem:[#allocation13 + $0x58] sm:$0xff]
    %v205 = vld [vmem:[#allocation13 + $0x60] sm:$0xff]
    %v206 = vld [vmem:[#allocation13 + $0x68] sm:$0xff]
    %v207 = vld [vmem:[#allocation13 + $0x70] sm:$0xff]
    %v208 = vld [vmem:[#allocation13 + $0x78] sm:$0xff]
    %v209 = vld [vmem:[#allocation13 + $0x80] sm:$0xff]
    %v210 = vld [vmem:[#allocation13 + $0x88] sm:$0xff]
    %v211 = vld [vmem:[#allocation13 + $0x90] sm:$0xff]
    %v212 = vld [vmem:[#allocation13 + $0x98] sm:$0xff]
    %v213 = vld [vmem:[#allocation13 + $0xa0] sm:$0xff]
    %v214 = vld [vmem:[#allocation13 + $0xa8] sm:$0xff]
    %v215 = vld [vmem:[#allocation13 + $0xb0] sm:$0xff]
    %v216 = vld [vmem:[#allocation13 + $0xb8] sm:$0xff]
    %v217 = vld [vmem:[#allocation13 + $0xc0] sm:$0xff]
    %v218 = vld [vmem:[#allocation13 + $0xc8] sm:$0xff]
    %v219 = vld [vmem:[#allocation13 + $0xd0] sm:$0xff]
    %v220 = vld [vmem:[#allocation13 + $0xd8] sm:$0xff]
    %v221 = vld [vmem:[#allocation13 + $0xe0] sm:$0xff]
    %v222 = vld [vmem:[#allocation13 + $0xe8] sm:$0xff]
    %v223 = vld [vmem:[#allocation13 + $0xf0] sm:$0xff]
    %v224 = vld [vmem:[#allocation13 + $0xf8] sm:$0xff]
    %v225 = vld [vmem:[#allocation13 + $0x100] sm:$0xff]
    %v226 = vld [vmem:[#allocation13 + $0x108] sm:$0xff]
    %v227 = vld [vmem:[#allocation13 + $0x110] sm:$0x1]
    %v228 = vld [vmem:[#allocation13 + $0x118] sm:$0x1]
    %vm229 = vcmask 72704
    %v231 = vsel %vm229, %v192, 0
    %vm233 = vcmask 1040384
    %v235 = vsel %vm233, %v227, 0
    %v238 = vsel %vm233, %v228, 0
    %240 = vmatpush.msra.mxu0 %v223
    %241 = vmatpush.msra.mxu0 %v221
    %242 = vmatpush.msra.mxu0 %v219
    %243 = vmatpush.msra.mxu0 %v217
    %244 = vmatpush.msra.mxu0 %v215
    %245 = vmatpush.msra.mxu0 %v213
    %246 = vmatpush.msra.mxu0 %v211
    %247 = vmatpush.msra.mxu0 %v209
    %248 = vmatpush.msra.mxu0 %v207
    %249 = vmatpush.msra.mxu0 %v205
    %250 = vmatpush.msra.mxu0 %v203
    %251 = vmatpush.msra.mxu0 %v201
    %252 = vmatpush.msra.mxu0 %v199
    %253 = vmatpush.msra.mxu0 %v197
    %254 = vmatpush.msra.mxu0 %v195
    %255 = vmatpush.msra.mxu0 %v193
    %256 = vmatmul.f32.gmra.mxu0 %v191
    %v257 = vpop.f32.mrf.mxu0
    %v258 = vadd.f32 0.0, %v257
    %259 = vdwg.mxu0
    %260 = vmatpush.msra.mxu0 0.0
    %261 = vmatpush.msra.mxu0 0.0
    %262 = vmatpush.msra.mxu0 0.0
    %263 = vmatpush.msra.mxu0 0.0
    %264 = vmatpush.msra.mxu0 0.0
    %265 = vmatpush.msra.mxu0 0.0
    %266 = vmatpush.msra.mxu0 0.0
    %267 = vmatpush.msra.mxu0 0.0
    %268 = vmatpush.msra.mxu0 0.0
    %269 = vmatpush.msra.mxu0 0.0
    %270 = vmatpush.msra.mxu0 0.0
    %271 = vmatpush.msra.mxu0 0.0
    %272 = vmatpush.msra.mxu0 0.0
    %273 = vmatpush.msra.mxu0 0.0
    %274 = vmatpush.msra.mxu0 %v235
    %275 = vmatpush.msra.mxu0 %v225
    %276 = vmatmul.f32.gmra.mxu0 %v231
    %v277 = vpop.f32.mrf.mxu0
    %v278 = vadd.f32 %v258, %v277
    %279 = vdwg.mxu0
    %280 = vmatpush.msra.mxu0 %v224
    %281 = vmatpush.msra.mxu0 %v222
    %282 = vmatpush.msra.mxu0 %v220
    %283 = vmatpush.msra.mxu0 %v218
    %284 = vmatpush.msra.mxu0 %v216
    %285 = vmatpush.msra.mxu0 %v214
    %286 = vmatpush.msra.mxu0 %v212
    %287 = vmatpush.msra.mxu0 %v210
    %288 = vmatpush.msra.mxu0 %v208
    %289 = vmatpush.msra.mxu0 %v206
    %290 = vmatpush.msra.mxu0 %v204
    %291 = vmatpush.msra.mxu0 %v202
    %292 = vmatpush.msra.mxu0 %v200
    %293 = vmatpush.msra.mxu0 %v198
    %294 = vmatpush.msra.mxu0 %v196
    %295 = vmatpush.msra.mxu0 %v194
    %296 = vmatmul.f32.gmra.mxu0 %v191
    %v297 = vpop.f32.mrf.mxu0
    %v298 = vadd.f32 0.0, %v297
    %299 = vdwg.mxu0
    %300 = vmatpush.msra.mxu0 0.0
    %301 = vmatpush.msra.mxu0 0.0
    %302 = vmatpush.msra.mxu0 0.0
    %303 = vmatpush.msra.mxu0 0.0
    %304 = vmatpush.msra.mxu0 0.0
    %305 = vmatpush.msra.mxu0 0.0
    %306 = vmatpush.msra.mxu0 0.0
    %307 = vmatpush.msra.mxu0 0.0
    %308 = vmatpush.msra.mxu0 0.0
    %309 = vmatpush.msra.mxu0 0.0
    %310 = vmatpush.msra.mxu0 0.0
    %311 = vmatpush.msra.mxu0 0.0
    %312 = vmatpush.msra.mxu0 0.0
    %313 = vmatpush.msra.mxu0 0.0
    %314 = vmatpush.msra.mxu0 %v238
    %315 = vmatpush.msra.mxu0 %v226
    %316 = vmatmul.f32.gmra.mxu0 %v231
    %v317 = vpop.f32.mrf.mxu0
    %v318 = vadd.f32 %v298, %v317
    %319 = vdwg.mxu0
    %v320 = vld [vmem:[#allocation8] sm:$0xff]
    %vm321 = vcmask 48128
    %v323 = vsel %vm321, %v320, 0
    %vm325 = vcmask 1045504
    %v327 = vsel %vm325, %v278, 0
    %v330 = vsel %vm325, %v191, 0
    %332 = vmatpush.msra.mxu0 0.0
    %333 = vmatpush.msra.mxu0 0.0
    %334 = vmatpush.msra.mxu0 0.0
    %335 = vmatpush.msra.mxu0 0.0
    %336 = vmatpush.msra.mxu0 0.0
    %337 = vmatpush.msra.mxu0 0.0
    %338 = vmatpush.msra.mxu0 0.0
    %339 = vmatpush.msra.mxu0 0.0
    %340 = vmatpush.msra.mxu0 0.0
    %341 = vmatpush.msra.mxu0 0.0
    %342 = vmatpush.msra.mxu0 0.0
    %343 = vmatpush.msra.mxu0 0.0
    %344 = vmatpush.msra.mxu0 0.0
    %345 = vmatpush.msra.mxu0 0.0
    %346 = vmatpush.msra.mxu0 0.0
    %347 = vmatpush.msra.mxu0 %v327
    %348 = vmatmul.f32.gmra.mxu0 %v323
    %v349 = vpop.f32.mrf.mxu0
    %v350 = vadd.f32 0.0, %v349
    %351 = vdwg.mxu0
    %352 = vmatpush.msra.mxu0 0.0
    %353 = vmatpush.msra.mxu0 0.0
    %354 = vmatpush.msra.mxu0 0.0
    %355 = vmatpush.msra.mxu0 0.0
    %356 = vmatpush.msra.mxu0 0.0
    %357 = vmatpush.msra.mxu0 0.0
    %358 = vmatpush.msra.mxu0 0.0
    %359 = vmatpush.msra.mxu0 0.0
    %360 = vmatpush.msra.mxu0 0.0
    %361 = vmatpush.msra.mxu0 0.0
    %362 = vmatpush.msra.mxu0 0.0
    %363 = vmatpush.msra.mxu0 0.0
    %364 = vmatpush.msra.mxu0 0.0
    %365 = vmatpush.msra.mxu0 0.0
    %366 = vmatpush.msra.mxu0 0.0
    %367 = vmatpush.msra.mxu0 %v330
    %368 = vmatmul.f32.gmra.mxu0 %v323
    %v369 = vpop.f32.mrf.mxu0
    %v370 = vadd.f32 0.0, %v369
    %371 = vdwg.mxu0
    %v372 = vld [vmem:[#allocation10] sm:$0xff]
    %v374 = vsel %vm321, %v372, 0
    %v377 = vsel %vm325, %v318, 0
    %379 = vmatpush.msra.mxu0 0.0
    %380 = vmatpush.msra.mxu0 0.0
    %381 = vmatpush.msra.mxu0 0.0
    %382 = vmatpush.msra.mxu0 0.0
    %383 = vmatpush.msra.mxu0 0.0
    %384 = vmatpush.msra.mxu0 0.0
    %385 = vmatpush.msra.mxu0 0.0
    %386 = vmatpush.msra.mxu0 0.0
    %387 = vmatpush.msra.mxu0 0.0
    %388 = vmatpush.msra.mxu0 0.0
    %389 = vmatpush.msra.mxu0 0.0
    %390 = vmatpush.msra.mxu0 0.0
    %391 = vmatpush.msra.mxu0 0.0
    %392 = vmatpush.msra.mxu0 0.0
    %393 = vmatpush.msra.mxu0 0.0
    %394 = vmatpush.msra.mxu0 %v377
    %395 = vmatmul.f32.gmra.mxu0 %v374
    %v396 = vpop.f32.mrf.mxu0
    %v397 = vadd.f32 0.0, %v396
    %398 = vdwg.mxu0
    %399 = vmatpush.msra.mxu0 0.0
    %400 = vmatpush.msra.mxu0 0.0
    %401 = vmatpush.msra.mxu0 0.0
    %402 = vmatpush.msra.mxu0 0.0
    %403 = vmatpush.msra.mxu0 0.0
    %404 = vmatpush.msra.mxu0 0.0
    %405 = vmatpush.msra.mxu0 0.0
    %406 = vmatpush.msra.mxu0 0.0
    %407 = vmatpush.msra.mxu0 0.0
    %408 = vmatpush.msra.mxu0 0.0
    %409 = vmatpush.msra.mxu0 0.0
    %410 = vmatpush.msra.mxu0 0.0
    %411 = vmatpush.msra.mxu0 0.0
    %412 = vmatpush.msra.mxu0 0.0
    %413 = vmatpush.msra.mxu0 0.0
    %414 = vmatpush.msra.mxu0 %v330
    %415 = vmatmul.f32.gmra.mxu0 %v374
    %v416 = vpop.f32.mrf.mxu0
    %v417 = vadd.f32 0.0, %v416
    %418 = vdwg.mxu0
    %v419 = vld [vmem:[#allocation5] sm:$0xff]
    %v420 = vld [vmem:[#allocation5 + $0x8] sm:$0xff]
    %v421 = vld [vmem:[#allocation11] sm:$0xff]
    %v422 = vld [vmem:[#allocation11 + $0x8] sm:$0xff]
    %v423 = vld [vmem:[#allocation11 + $0x10] sm:$0xff]
    %v424 = vld [vmem:[#allocation11 + $0x18] sm:$0xff]
    %v425 = vld [vmem:[#allocation11 + $0x20] sm:$0xff]
    %v426 = vld [vmem:[#allocation11 + $0x28] sm:$0xff]
    %v427 = vld [vmem:[#allocation11 + $0x30] sm:$0xff]
    %v428 = vld [vmem:[#allocation11 + $0x38] sm:$0xff]
    %v429 = vld [vmem:[#allocation11 + $0x40] sm:$0xff]
    %v430 = vld [vmem:[#allocation11 + $0x48] sm:$0xff]
    %v431 = vld [vmem:[#allocation11 + $0x50] sm:$0xff]
    %v432 = vld [vmem:[#allocation11 + $0x58] sm:$0xff]
    %v433 = vld [vmem:[#allocation11 + $0x60] sm:$0xff]
    %v434 = vld [vmem:[#allocation11 + $0x68] sm:$0xff]
    %v435 = vld [vmem:[#allocation11 + $0x70] sm:$0xff]
    %v436 = vld [vmem:[#allocation11 + $0x78] sm:$0xff]
    %v437 = vld [vmem:[#allocation11 + $0x80] sm:$0xff]
    %v438 = vld [vmem:[#allocation11 + $0x88] sm:$0xff]
    %v439 = vld [vmem:[#allocation11 + $0x90] sm:$0xff]
    %v440 = vld [vmem:[#allocation11 + $0x98] sm:$0xff]
    %v441 = vld [vmem:[#allocation11 + $0xa0] sm:$0xff]
    %v442 = vld [vmem:[#allocation11 + $0xa8] sm:$0xff]
    %v443 = vld [vmem:[#allocation11 + $0xb0] sm:$0xff]
    %v444 = vld [vmem:[#allocation11 + $0xb8] sm:$0xff]
    %v445 = vld [vmem:[#allocation11 + $0xc0] sm:$0xff]
    %v446 = vld [vmem:[#allocation11 + $0xc8] sm:$0xff]
    %v447 = vld [vmem:[#allocation11 + $0xd0] sm:$0xff]
    %v448 = vld [vmem:[#allocation11 + $0xd8] sm:$0xff]
    %v449 = vld [vmem:[#allocation11 + $0xe0] sm:$0xff]
    %v450 = vld [vmem:[#allocation11 + $0xe8] sm:$0xff]
    %v451 = vld [vmem:[#allocation11 + $0xf0] sm:$0xff]
    %v452 = vld [vmem:[#allocation11 + $0xf8] sm:$0xff]
    %453 = vmatpush.msra.mxu0 %v436
    %454 = vmatpush.msra.mxu0 %v435
    %455 = vmatpush.msra.mxu0 %v434
    %456 = vmatpush.msra.mxu0 %v433
    %457 = vmatpush.msra.mxu0 %v432
    %458 = vmatpush.msra.mxu0 %v431
    %459 = vmatpush.msra.mxu0 %v430
    %460 = vmatpush.msra.mxu0 %v429
    %461 = vmatpush.msra.mxu0 %v428
    %462 = vmatpush.msra.mxu0 %v427
    %463 = vmatpush.msra.mxu0 %v426
    %464 = vmatpush.msra.mxu0 %v425
    %465 = vmatpush.msra.mxu0 %v424
    %466 = vmatpush.msra.mxu0 %v423
    %467 = vmatpush.msra.mxu0 %v422
    %468 = vmatpush.msra.mxu0 %v421
    %469 = vmatmul.f32.gmra.mxu0 %v419
    %v470 = vpop.f32.mrf.mxu0
    %v471 = vadd.f32 %v350, %v470
    %472 = vdwg.mxu0
    %473 = vmatpush.msra.mxu0 %v452
    %474 = vmatpush.msra.mxu0 %v451
    %475 = vmatpush.msra.mxu0 %v450
    %476 = vmatpush.msra.mxu0 %v449
    %477 = vmatpush.msra.mxu0 %v448
    %478 = vmatpush.msra.mxu0 %v447
    %479 = vmatpush.msra.mxu0 %v446
    %480 = vmatpush.msra.mxu0 %v445
    %481 = vmatpush.msra.mxu0 %v444
    %482 = vmatpush.msra.mxu0 %v443
    %483 = vmatpush.msra.mxu0 %v442
    %484 = vmatpush.msra.mxu0 %v441
    %485 = vmatpush.msra.mxu0 %v440
    %486 = vmatpush.msra.mxu0 %v439
    %487 = vmatpush.msra.mxu0 %v438
    %488 = vmatpush.msra.mxu0 %v437
    %489 = vmatmul.f32.gmra.mxu0 %v420
    %v490 = vpop.f32.mrf.mxu0
    %v491 = vadd.f32 %v471, %v490
    %492 = vdwg.mxu0
    %v493 = vadd.f32 %v491, %v397
    %v494 = vld [vmem:[%s7] sm:$0x1]
    %v496 = vperm.slane %v494, 0
    %v498 = vadd.f32 %v493, %v496
    %v499 = vmax.f32 %v498, 0.0
    %500 = vst [vmem:[#allocation14] sm:$0xff] %v499
    %501 = vst [vmem:[#allocation14 + $0x8] sm:$0xff] %v417
    %502 = vst [vmem:[#allocation14 + $0x10] sm:$0xff] %v370
    // Predicated region
    $region62: #{tpu_custom_call.1} parent=1 // pred_check
      _
    $region63: #{tpu_custom_call.1} parent=1 // pred_check_branch
      %504 = sbr.rel (0) target = $region65
    $region64: #{tpu_custom_call.1} parent=1 // pred_region
      %506 = vsyncadd [#allocation4], 0
      %s508 = sshll.u32 [#allocation14], 4
      %s509 = int_to_ptr.vmem [resolvable:$true] %s508
      %s510 = sshll.u32 %s8, 4
      %s511 = int_to_ptr.hbm [resolvable:$true] %s510
      %513 = dma.vmem_to_hbm [thread:$0]  %s509, 384, %s511, [#allocation4]
    $region65: #{tpu_custom_call.1} parent=1 // pred_fallthru
      _
    // Predicated region
    $region66: #{tpu_custom_call.1} parent=1 // pred_check
      _
    $region67: #{tpu_custom_call.1} parent=1 // pred_check_branch
      %515 = sbr.rel (0) target = $region69
    $region68: #{tpu_custom_call.1} parent=1 // pred_region
      %517 = vsyncadd [#allocation16], 0
      %s519 = sshll.u32 [#allocation15], 4
      %s520 = int_to_ptr.vmem [resolvable:$true] %s519
      %s521 = sshll.u32 %s9, 4
      %s522 = int_to_ptr.hbm [resolvable:$true] %s521
      %524 = dma.vmem_to_hbm [thread:$0]  %s520, 16, %s522, [#allocation16]
    $region69: #{tpu_custom_call.1} parent=1 // pred_fallthru
      _
    // Predicated region
    $region70: #{tpu_custom_call.1} parent=1 // pred_check
      _
    $region71: #{tpu_custom_call.1} parent=1 // pred_check_branch
      %526 = sbr.rel (0) target = $region73
    $region72: #{tpu_custom_call.1} parent=1 // pred_region
      %528 = dma.done [#allocation4], 384
    $region73: #{tpu_custom_call.1} parent=1 // pred_fallthru
      _
    // Predicated region
    $region74: #{tpu_custom_call.1} parent=1 // pred_check
      _
    $region75: #{tpu_custom_call.1} parent=1 // pred_check_branch
      %530 = sbr.rel (0) target = $region77
    $region76: #{tpu_custom_call.1} parent=1 // pred_region
      %532 = dma.done [#allocation16], 16
    $region77: #{tpu_custom_call.1} parent=1 // pred_fallthru
      _
    %533 = vsyncpa [#allocation3], 1
    %534 = vsyncpa [#allocation6], 1
    %535 = vsyncpa [#allocation9], 1
    %536 = vsyncpa [#allocation12], 1
    %537 = vsyncpa [#allocation4], 1
    %538 = vsyncpa [#allocation16], 1

</llo_original>
